<compile_context>
chip_gen: v5e
topology: v5e:2x2
jax: 0.10.0
libtpu: 0.0.40
codegen_flags: <defaults>
</compile_context>

<pallas_src>
import functools
import math

import jax
import jax.numpy as jnp
from jax.experimental import pallas as pl
from jax.experimental.pallas import tpu as pltpu


# --------------------------------------------------------------------------- #
# Offline parameter fusion (done once, outside the jitted per-call path)       #
# --------------------------------------------------------------------------- #
def fuse_qkv_params(wq, wk, wv, bq, bk, bv):
    """Fuse Q/K/V Linear params into one slab; fold 1/sqrt(dim_k) into Q; bf16 weights."""
    dim_k = wq.shape[1]
    scale = 1.0 / math.sqrt(float(dim_k))
    # Q columns pre-scaled so the kernel never multiplies the L x L score tensor.
    wqkv = jnp.concatenate([wq * scale, wk, wv], axis=1).astype(jnp.bfloat16)
    bqkv = jnp.concatenate([bq * scale, bk, bv], axis=0).reshape(1, -1).astype(jnp.float32)
    return wqkv, bqkv


# --------------------------------------------------------------------------- #
# Fused self-attention kernel                                                  #
# --------------------------------------------------------------------------- #
def _self_attention_kernel(x_ref, wqkv_ref, bqkv_ref, o_ref, *, dim_k, dim_v):
    bb, L, D = x_ref.shape
    # Fused Q/K/V projection: flatten (batch_block, L) so the matmul M dim is
    # bb*L and the fused weight gives N = 2*dim_k + dim_v in one MXU pass.
    # bf16 operands, f32 accumulation; bias added in f32 after the matmul.
    x2 = x_ref[...].reshape(bb * L, D).astype(jnp.bfloat16)
    qkv = jnp.dot(x2, wqkv_ref[...], preferred_element_type=jnp.float32) + bqkv_ref[...]
    qkv = qkv.reshape(bb, L, 2 * dim_k + dim_v)
    # dim_k / dim_v multiples of 128 keep these splits on lane-tile boundaries
    # (free vreg selects; no cross-lane relayout).
    q = qkv[:, :, :dim_k].astype(jnp.bfloat16)          # scale already folded in
    k = qkv[:, :, dim_k:2 * dim_k].astype(jnp.bfloat16)
    v = qkv[:, :, 2 * dim_k:].astype(jnp.bfloat16)

    # Scores + numerically stable softmax (batched matmul via einsum).
    s = jnp.einsum("bqd,bkd->bqk", q, k, preferred_element_type=jnp.float32)
    s = s - jnp.max(s, axis=-1, keepdims=True)
    e = jnp.exp(s)
    p = e * pl.reciprocal(jnp.sum(e, axis=-1, keepdims=True), approx=True)

    o_ref[...] = jnp.einsum("bqk,bkd->bqd", p.astype(jnp.bfloat16), v,
                            preferred_element_type=jnp.float32).astype(o_ref.dtype)


def self_attention_fused(x, wqkv, bqkv, *, dim_k, dim_v, block_b=None):
    """x: (B, L, input_dim) f32; wqkv: (D, 2*dim_k+dim_v) bf16 (pre-fused, pre-scaled);
    bqkv: (1, 2*dim_k+dim_v) f32. Returns (B, L, dim_v) f32."""
    B, L, D = x.shape
    dqkv = 2 * dim_k + dim_v

    if block_b is None:
        # Single block (no grid loop) unless per-block work is big enough to
        # amortize a grid step and give v7x's 2nd TensorCore real work.
        if B % 2 == 0 and (B // 2) * L >= 256:
            block_b = B // 2
        else:
            block_b = B
    assert B % block_b == 0, "batch must be divisible by block_b"
    num_blocks = B // block_b
    grid = (num_blocks,)

    # Grid-invariant weight/bias: single-buffer them when the grid has >1 step
    # so the default double-buffering does not double their VMEM residency.
    w_mode = pl.Buffered(1) if num_blocks > 1 else None

    # VMEM budget: double-buffered x/out blocks, weight slab, f32 qkv and the
    # three L x L softmax temporaries, with 2x headroom. Clamp to a range that
    # is safe on all generations (v7x physical VMEM is 64 MiB).
    f32b, bf16b = 4, 2
    block_bytes = (
        2 * block_b * L * D * f32b                     # x block (double buffered)
        + 2 * block_b * L * dim_v * f32b               # out block (double buffered)
        + (1 if w_mode is not None else 2) * (D * dqkv * bf16b + dqkv * f32b)
        + block_b * L * dqkv * f32b                    # qkv temporary
        + 3 * block_b * L * L * f32b                   # s / e / p temporaries
    )
    vmem_limit = int(min(64 << 20, max(32 << 20, 2 * block_bytes)))

    kernel = functools.partial(_self_attention_kernel, dim_k=dim_k, dim_v=dim_v)

    return pl.pallas_call(
        kernel,
        out_shape=jax.ShapeDtypeStruct((B, L, dim_v), jnp.float32),
        grid=grid,
        in_specs=[
            pl.BlockSpec((block_b, L, D), lambda i: (i, 0, 0)),
            pl.BlockSpec((D, dqkv), lambda i: (0, 0), pipeline_mode=w_mode),
            pl.BlockSpec((1, dqkv), lambda i: (0, 0), pipeline_mode=w_mode),
        ],
        out_specs=pl.BlockSpec((block_b, L, dim_v), lambda i: (i, 0, 0)),
        compiler_params=pltpu.CompilerParams(
            dimension_semantics=("parallel",),
            vmem_limit_bytes=vmem_limit,
        ),
    )(x, wqkv, bqkv)


# Convenience wrapper matching the original module's parameterization.
def self_attention(x, wq, wk, wv, bq, bk, bv, *, block_b=None):
    wqkv, bqkv = fuse_qkv_params(wq, wk, wv, bq, bk, bv)
    return self_attention_fused(x, wqkv, bqkv,
                                dim_k=wq.shape[1], dim_v=wv.shape[1], block_b=block_b)


# --------------------------------------------------------------------------- #
# Pure-JAX reference (matches the PyTorch Self_Attention.forward)              #
# --------------------------------------------------------------------------- #
def reference_self_attention(x, wq, wk, wv, bq, bk, bv):
    q = x @ wq + bq
    k = x @ wk + bk
    v = x @ wv + bv
    scale = 1.0 / math.sqrt(float(wq.shape[1]))
    a = jax.nn.softmax(jnp.einsum("bqd,bkd->bqk", q, k) * scale, axis=-1)
    return jnp.einsum("bqk,bkd->bqd", a, v)


if __name__ == "__main__":
    key = jax.random.PRNGKey(0)
    kx, kwq, kwk, kwv, kbq, kbk, kbv = jax.random.split(key, 7)

    # Small shapes consistent with the module's use (Self_Attention(128, 128, 128)).
    B, L, INPUT_DIM, DIM_K, DIM_V = 4, 16, 128, 128, 128

    def uniform(k, shape, fan_in):
        lim = 1.0 / math.sqrt(fan_in)
        return jax.random.uniform(k, shape, jnp.float32, -lim, lim)

    x = jax.random.normal(kx, (B, L, INPUT_DIM), dtype=jnp.float32)
    # nn.Linear default init: U(-1/sqrt(in), 1/sqrt(in)); weights stored (in, out).
    wq = uniform(kwq, (INPUT_DIM, DIM_K), INPUT_DIM)
    wk = uniform(kwk, (INPUT_DIM, DIM_K), INPUT_DIM)
    wv = uniform(kwv, (INPUT_DIM, DIM_V), INPUT_DIM)
    bq = uniform(kbq, (DIM_K,), INPUT_DIM)
    bk = uniform(kbk, (DIM_K,), INPUT_DIM)
    bv = uniform(kbv, (DIM_V,), INPUT_DIM)

    # Fuse (and bf16-cast / scale-fold) the parameters ONCE, outside the jitted
    # per-call path, then jit only the pallas wrapper.
    wqkv, bqkv = fuse_qkv_params(wq, wk, wv, bq, bk, bv)
    wqkv, bqkv = jax.block_until_ready((wqkv, bqkv))

    attn = jax.jit(functools.partial(self_attention_fused, dim_k=DIM_K, dim_v=DIM_V))
    out = jax.block_until_ready(attn(x, wqkv, bqkv))
    assert out.shape == (B, L, DIM_V), out.shape

    ref = reference_self_attention(x, wq, wk, wv, bq, bk, bv)
    # bf16 MXU operands (f32 accumulation) + approx reciprocal => loose tolerance.
    assert jnp.allclose(out, ref, rtol=2e-2, atol=2e-2), \
        float(jnp.max(jnp.abs(out - ref)))

    print("KERNEL_OK")
</pallas_src>

<mosaic_0001>
module attributes {stable_mosaic.version = 11 : i64} {
  func.func @_self_attention_kernel(%arg0: i32, %arg1: memref<4x16x128xf32, #tpu.memory_space<vmem>>, %arg2: memref<128x384xbf16, #tpu.memory_space<vmem>>, %arg3: memref<1x384xf32, #tpu.memory_space<vmem>>, %arg4: memref<4x16x128xf32, #tpu.memory_space<vmem>>) attributes {dimension_semantics = [#tpu.dimension_semantics<parallel>], iteration_bounds = array<i64: 1>, scalar_prefetch = 0 : i64, scratch_operands = 0 : i64, tpu.core_type = #tpu.core_type<tc>, window_params = [{transform_indices = @transform_0, window_bounds = array<i64: 4, 16, 128>}, {pipeline_mode = #tpu.pipeline_mode<synchronous>, transform_indices = @transform_1, window_bounds = array<i64: 128, 384>}, {pipeline_mode = #tpu.pipeline_mode<synchronous>, transform_indices = @transform_2, window_bounds = array<i64: 1, 384>}, {transform_indices = @transform_3, window_bounds = array<i64: 4, 16, 128>}]} {
    %c0 = arith.constant 0 : index
    %c0_0 = arith.constant 0 : index
    %c0_1 = arith.constant 0 : index
    %0 = vector.load %arg1[%c0, %c0_0, %c0_1] : memref<4x16x128xf32, #tpu.memory_space<vmem>>, vector<4x16x128xf32>
    %1 = vector.shape_cast %0 : vector<4x16x128xf32> to vector<64x128xf32>
    %2 = arith.truncf %1 : vector<64x128xf32> to vector<64x128xbf16>
    %c0_2 = arith.constant 0 : index
    %c0_3 = arith.constant 0 : index
    %3 = vector.load %arg2[%c0_2, %c0_3] : memref<128x384xbf16, #tpu.memory_space<vmem>>, vector<128x384xbf16>
    %cst = arith.constant dense<0.000000e+00> : vector<64x384xf32>
    %4 = tpu.matmul %2, %3, %cst {dimension_numbers = #tpu.dot_dimension_numbers<[1], [0], [0], [1], [0, 0, 1, 1], [], []>} : vector<64x128xbf16>, vector<128x384xbf16>, vector<64x384xf32> -> vector<64x384xf32>
    %c0_4 = arith.constant 0 : index
    %c0_5 = arith.constant 0 : index
    %5 = vector.load %arg3[%c0_4, %c0_5] : memref<1x384xf32, #tpu.memory_space<vmem>>, vector<1x384xf32>
    %6 = vector.broadcast %5 : vector<1x384xf32> to vector<64x384xf32>
    %7 = arith.addf %4, %6 : vector<64x384xf32>
    %8 = vector.shape_cast %7 : vector<64x384xf32> to vector<4x16x384xf32>
    %9 = vector.extract_strided_slice %8 {offsets = [0, 0, 0], sizes = [4, 16, 128], strides = [1, 1, 1]} : vector<4x16x384xf32> to vector<4x16x128xf32>
    %10 = arith.truncf %9 : vector<4x16x128xf32> to vector<4x16x128xbf16>
    %11 = vector.extract_strided_slice %8 {offsets = [0, 0, 128], sizes = [4, 16, 128], strides = [1, 1, 1]} : vector<4x16x384xf32> to vector<4x16x128xf32>
    %12 = arith.truncf %11 : vector<4x16x128xf32> to vector<4x16x128xbf16>
    %13 = vector.extract_strided_slice %8 {offsets = [0, 0, 256], sizes = [4, 16, 128], strides = [1, 1, 1]} : vector<4x16x384xf32> to vector<4x16x128xf32>
    %14 = arith.truncf %13 : vector<4x16x128xf32> to vector<4x16x128xbf16>
    "tpu.trace_start"() <{level = 10 : i32, message = "bqd,bkd->bqk"}> : () -> ()
    %cst_6 = arith.constant dense<0.000000e+00> : vector<4x16x16xf32>
    %15 = tpu.matmul %10, %12, %cst_6 {dimension_numbers = #tpu.dot_dimension_numbers<[2], [2], [1], [1], [0, 0, 0, 1, 1, 1], [0], [0]>} : vector<4x16x128xbf16>, vector<4x16x128xbf16>, vector<4x16x16xf32> -> vector<4x16x16xf32>
    "tpu.trace_stop"() : () -> ()
    %cst_7 = arith.constant dense<0xFF800000> : vector<4x16xf32>
    %16 = vector.multi_reduction <maximumf>, %15, %cst_7 [2] : vector<4x16x16xf32> to vector<4x16xf32>
    %17 = vector.shape_cast %16 : vector<4x16xf32> to vector<4x16x1xf32>
    %18 = vector.broadcast %17 : vector<4x16x1xf32> to vector<4x16x16xf32>
    %19 = arith.subf %15, %18 : vector<4x16x16xf32>
    %20 = math.exp %19 : vector<4x16x16xf32>
    %cst_8 = arith.constant dense<0.000000e+00> : vector<4x16xf32>
    %21 = vector.multi_reduction <add>, %20, %cst_8 [2] : vector<4x16x16xf32> to vector<4x16xf32>
    %22 = vector.shape_cast %21 : vector<4x16xf32> to vector<4x16x1xf32>
    %23 = tpu.reciprocal %22 {approx = true} : vector<4x16x1xf32> -> vector<4x16x1xf32>
    %24 = vector.broadcast %23 : vector<4x16x1xf32> to vector<4x16x16xf32>
    %25 = arith.mulf %20, %24 : vector<4x16x16xf32>
    %26 = arith.truncf %25 : vector<4x16x16xf32> to vector<4x16x16xbf16>
    "tpu.trace_start"() <{level = 10 : i32, message = "bqk,bkd->bqd"}> : () -> ()
    %cst_9 = arith.constant dense<0.000000e+00> : vector<4x16x128xf32>
    %27 = tpu.matmul %26, %14, %cst_9 {dimension_numbers = #tpu.dot_dimension_numbers<[2], [1], [1], [2], [0, 0, 0, 1, 1, 2], [0], [0]>} : vector<4x16x16xbf16>, vector<4x16x128xbf16>, vector<4x16x128xf32> -> vector<4x16x128xf32>
    "tpu.trace_stop"() : () -> ()
    %c0_10 = arith.constant 0 : index
    %c0_11 = arith.constant 0 : index
    %c0_12 = arith.constant 0 : index
    %28 = vector.load %arg4[%c0_10, %c0_11, %c0_12] : memref<4x16x128xf32, #tpu.memory_space<vmem>>, vector<4x16x128xf32>
    tpu.vector_store %arg4[%c0_10, %c0_11, %c0_12], %27 {strides = array<i32>} : memref<4x16x128xf32, #tpu.memory_space<vmem>>, vector<4x16x128xf32>,
    return
  }
  func.func @transform_0(%arg0: i32) -> (i32, i32, i32) {
    %c0_i32 = arith.constant 0 : i32
    %c0_i32_0 = arith.constant 0 : i32
    %c0_i32_1 = arith.constant 0 : i32
    return %arg0, %c0_i32, %c0_i32_0 : i32, i32, i32
  }
  func.func @transform_1(%arg0: i32) -> (i32, i32) {
    %c0_i32 = arith.constant 0 : i32
    %c0_i32_0 = arith.constant 0 : i32
    %c0_i32_1 = arith.constant 0 : i32
    return %c0_i32, %c0_i32_0 : i32, i32
  }
  func.func @transform_2(%arg0: i32) -> (i32, i32) {
    %c0_i32 = arith.constant 0 : i32
    %c0_i32_0 = arith.constant 0 : i32
    %c0_i32_1 = arith.constant 0 : i32
    return %c0_i32, %c0_i32_0 : i32, i32
  }
  func.func @transform_3(%arg0: i32) -> (i32, i32, i32) {
    %c0_i32 = arith.constant 0 : i32
    %c0_i32_0 = arith.constant 0 : i32
    %c0_i32_1 = arith.constant 0 : i32
    return %arg0, %c0_i32, %c0_i32_0 : i32, i32, i32
  }
}

</mosaic_0001>

<llo_original>
// kernel: self_attention_fused.1
$region0: #{self_attention_fused.1}
  #allocation0 [shape = 'u32[]', space=smem, size = 0x4, offset = 0x4, fixed_abs, tag = 'smem constant byte address 0x4 - core index']
  #allocation1 [shape = 'u32[72,128]{1,0:T(1,128)}', space=vmem, size = 0x9000, scoped, tag = 'internal scratch']
  %s0 = inlined_call_operand.hbm [shape: f32[4,16,128], index: 0, kind: input, shape index: {}]
  %s1 = inlined_call_operand.hbm [shape: bf16[128,384], index: 1, kind: input, shape index: {}]
  %s2 = inlined_call_operand.hbm [shape: f32[1,384], index: 2, kind: input, shape index: {}]
  %s3 = inlined_call_operand.hbm [shape: f32[4,16,128], index: 3, kind: output, shape index: {}]
  %s4 = sld [smem:[#allocation0]]
  $region34: #{self_attention_fused.1} parent=0
    _
  %s6 = ssub.s32 1, %s4
  %s7 = scalar_select 0, %s6, %s4
  $region1: #{self_attention_fused.1} parent=0
    #allocation2 [shape = 'u8[32768]{0}', space=vmem, size = 0x8000, scoped, tag = 'input window, operand 0, single buffered']
    #allocation3 [shape = 's32[1]{0}', space=sflag, size = 0x4, scoped, tag = 'scoped memory for self_attention_fused.1']
    #allocation4 [shape = 's32[1]{0}', space=sflag, size = 0x4, scoped, tag = 'scoped memory for self_attention_fused.1']
    #allocation5 [shape = 'u8[98304]{0}', space=vmem, size = 0x18000, scoped, tag = 'input window, operand 1, single buffered']
    #allocation6 [shape = 's32[1]{0}', space=sflag, size = 0x4, scoped, tag = 'scoped memory for self_attention_fused.1']
    #allocation7 [shape = 'u8[1536]{0}', space=vmem, size = 0x800, scoped, tag = 'input window, operand 2, single buffered']
    #allocation8 [shape = 'u8[32768]{0}', space=vmem, size = 0x8000, scoped, tag = 'output window, operand 0, single buffered']
    %8 = vsyncpa [#allocation3], 0
    %9 = vsyncpa [#allocation6], 0
    %10 = vsyncpa [#allocation4], 0
    // Predicated region
    $region2: #{self_attention_fused.1} parent=1 // pred_check
      _
    $region3: #{self_attention_fused.1} parent=1 // pred_check_branch
      %12 = sbr.rel (0) target = $region5
    $region4: #{self_attention_fused.1} parent=1 // pred_region
      %14 = vsyncadd [#allocation3], 0
      %s15 = sshll.u32 %s0, 4
      %s16 = int_to_ptr.hbm [resolvable:$true] %s15
      %s17 = sshll.u32 [#allocation2], 4
      %s18 = int_to_ptr.vmem [resolvable:$true] %s17
      %23 = dma.hbm_to_vmem [thread:$0]  %s16, 1024, %s18, [#allocation3], 128, 128, 8
    $region5: #{self_attention_fused.1} parent=1 // pred_fallthru
      _
    // Predicated region
    $region6: #{self_attention_fused.1} parent=1 // pred_check
      _
    $region7: #{self_attention_fused.1} parent=1 // pred_check_branch
      %25 = sbr.rel (0) target = $region9
    $region8: #{self_attention_fused.1} parent=1 // pred_region
      %27 = vsyncadd [#allocation6], 0
      %s28 = sshll.u32 %s1, 4
      %s29 = int_to_ptr.hbm [resolvable:$true] %s28
      %s30 = sshll.u32 [#allocation5], 4
      %s31 = int_to_ptr.vmem [resolvable:$true] %s30
      %36 = dma.hbm_to_vmem [thread:$0]  %s29, 3072, %s31, [#allocation6], 192, 192, 12
    $region9: #{self_attention_fused.1} parent=1 // pred_fallthru
      _
    // Predicated region
    $region10: #{self_attention_fused.1} parent=1 // pred_check
      _
    $region11: #{self_attention_fused.1} parent=1 // pred_check_branch
      %38 = sbr.rel (0) target = $region13
    $region12: #{self_attention_fused.1} parent=1 // pred_region
      %40 = vsyncadd [#allocation6], 0
      %s42 = sshll.u32 %s2, 4
      %s43 = int_to_ptr.hbm [resolvable:$true] %s42
      %s44 = sshll.u32 [#allocation7], 4
      %s45 = int_to_ptr.vmem [resolvable:$true] %s44
      %47 = dma.hbm_to_vmem [thread:$0]  %s43, 48, %s45, [#allocation6]
    $region13: #{self_attention_fused.1} parent=1 // pred_fallthru
      _
    // Predicated region
    $region14: #{self_attention_fused.1} parent=1 // pred_check
      _
    $region15: #{self_attention_fused.1} parent=1 // pred_check_branch
      %49 = sbr.rel (0) target = $region17
    $region16: #{self_attention_fused.1} parent=1 // pred_region
      %51 = dma.done [#allocation3], 1024
    $region17: #{self_attention_fused.1} parent=1 // pred_fallthru
      _
    // Predicated region
    $region18: #{self_attention_fused.1} parent=1 // pred_check
      _
    $region19: #{self_attention_fused.1} parent=1 // pred_check_branch
      %53 = sbr.rel (0) target = $region21
    $region20: #{self_attention_fused.1} parent=1 // pred_region
      %55 = dma.done [#allocation6], 3072
    $region21: #{self_attention_fused.1} parent=1 // pred_fallthru
      _
    // Predicated region
    $region22: #{self_attention_fused.1} parent=1 // pred_check
      _
    $region23: #{self_attention_fused.1} parent=1 // pred_check_branch
      %57 = sbr.rel (0) target = $region25
    $region24: #{self_attention_fused.1} parent=1 // pred_region
      %59 = dma.done [#allocation6], 48
    $region25: #{self_attention_fused.1} parent=1 // pred_fallthru
      _
    %v61 = vld [vmem:[#allocation2] sm:$0xff]
    %v62 = vld [vmem:[#allocation2 + $0x8] sm:$0xff]
    %v63 = vld [vmem:[#allocation2 + $0x10] sm:$0xff]
    %v64 = vld [vmem:[#allocation2 + $0x18] sm:$0xff]
    %v65 = vld [vmem:[#allocation2 + $0x20] sm:$0xff]
    %v66 = vld [vmem:[#allocation2 + $0x28] sm:$0xff]
    %v67 = vld [vmem:[#allocation2 + $0x30] sm:$0xff]
    %v68 = vld [vmem:[#allocation2 + $0x38] sm:$0xff]
    %v69 = vpack.c.bf16 %v62, %v61
    %v70 = vpack.c.bf16 %v64, %v63
    %v71 = vpack.c.bf16 %v66, %v65
    %v72 = vpack.c.bf16 %v68, %v67
    %v73 = vld [vmem:[#allocation5] sm:$0xff]
    %v74 = vld [vmem:[#allocation5 + $0x8] sm:$0xf]
    %v75 = vld [vmem:[#allocation5 + $0xc] sm:$0xff]
    %v76 = vld [vmem:[#allocation5 + $0x14] sm:$0xf]
    %v77 = vld [vmem:[#allocation5 + $0x18] sm:$0xff]
    %v78 = vld [vmem:[#allocation5 + $0x20] sm:$0xf]
    %v79 = vld [vmem:[#allocation5 + $0x24] sm:$0xff]
    %v80 = vld [vmem:[#allocation5 + $0x2c] sm:$0xf]
    %v81 = vld [vmem:[#allocation5 + $0x30] sm:$0xff]
    %v82 = vld [vmem:[#allocation5 + $0x38] sm:$0xf]
    %v83 = vld [vmem:[#allocation5 + $0x3c] sm:$0xff]
    %v84 = vld [vmem:[#allocation5 + $0x44] sm:$0xf]
    %v85 = vld [vmem:[#allocation5 + $0x48] sm:$0xff]
    %v86 = vld [vmem:[#allocation5 + $0x50] sm:$0xf]
    %v87 = vld [vmem:[#allocation5 + $0x54] sm:$0xff]
    %v88 = vld [vmem:[#allocation5 + $0x5c] sm:$0xf]
    %v89 = vld [vmem:[#allocation5 + $0x60] sm:$0xff]
    %v90 = vld [vmem:[#allocation5 + $0x68] sm:$0xf]
    %v91 = vld [vmem:[#allocation5 + $0x6c] sm:$0xff]
    %v92 = vld [vmem:[#allocation5 + $0x74] sm:$0xf]
    %v93 = vld [vmem:[#allocation5 + $0x78] sm:$0xff]
    %v94 = vld [vmem:[#allocation5 + $0x80] sm:$0xf]
    %v95 = vld [vmem:[#allocation5 + $0x84] sm:$0xff]
    %v96 = vld [vmem:[#allocation5 + $0x8c] sm:$0xf]
    %v97 = vld [vmem:[#allocation5 + $0x90] sm:$0xff]
    %v98 = vld [vmem:[#allocation5 + $0x98] sm:$0xf]
    %v99 = vld [vmem:[#allocation5 + $0x9c] sm:$0xff]
    %v100 = vld [vmem:[#allocation5 + $0xa4] sm:$0xf]
    %v101 = vld [vmem:[#allocation5 + $0xa8] sm:$0xff]
    %v102 = vld [vmem:[#allocation5 + $0xb0] sm:$0xf]
    %v103 = vld [vmem:[#allocation5 + $0xb4] sm:$0xff]
    %v104 = vld [vmem:[#allocation5 + $0xbc] sm:$0xf]
    %v105 = vld [vmem:[#allocation7] sm:$0x7]
    %v107 = vperm.slane %v105, 0
    %v108 = vperm.slane %v105, 1
    %v109 = vperm.slane %v105, 2
    %v145 = vunpack.c.l.b16 %v73
    %v146 = vunpack.c.h.b16 %v73
    %v147 = vunpack.c.l.b16 %v74
    %v148 = vunpack.c.l.b16 %v75
    %v149 = vunpack.c.h.b16 %v75
    %v150 = vunpack.c.l.b16 %v76
    %v151 = vunpack.c.l.b16 %v77
    %v152 = vunpack.c.h.b16 %v77
    %v153 = vunpack.c.l.b16 %v78
    %v154 = vunpack.c.l.b16 %v79
    %v155 = vunpack.c.h.b16 %v79
    %v156 = vunpack.c.l.b16 %v80
    %v157 = vunpack.c.l.b16 %v81
    %v158 = vunpack.c.h.b16 %v81
    %v159 = vunpack.c.l.b16 %v82
    %v160 = vunpack.c.l.b16 %v83
    %v161 = vunpack.c.h.b16 %v83
    %v162 = vunpack.c.l.b16 %v84
    %v163 = vunpack.c.l.b16 %v85
    %v164 = vunpack.c.h.b16 %v85
    %v165 = vunpack.c.l.b16 %v86
    %v166 = vunpack.c.l.b16 %v87
    %v167 = vunpack.c.h.b16 %v87
    %v168 = vunpack.c.l.b16 %v88
    %v169 = vunpack.c.l.b16 %v89
    %v170 = vunpack.c.h.b16 %v89
    %v171 = vunpack.c.l.b16 %v90
    %v172 = vunpack.c.l.b16 %v91
    %v173 = vunpack.c.h.b16 %v91
    %v174 = vunpack.c.l.b16 %v92
    %v175 = vunpack.c.l.b16 %v93
    %v176 = vunpack.c.h.b16 %v93
    %v177 = vunpack.c.l.b16 %v94
    %v178 = vunpack.c.l.b16 %v95
    %v179 = vunpack.c.h.b16 %v95
    %v180 = vunpack.c.l.b16 %v96
    %v181 = vunpack.c.l.b16 %v97
    %v182 = vunpack.c.h.b16 %v97
    %v183 = vunpack.c.l.b16 %v98
    %v184 = vunpack.c.l.b16 %v99
    %v185 = vunpack.c.h.b16 %v99
    %v186 = vunpack.c.l.b16 %v100
    %v187 = vunpack.c.l.b16 %v101
    %v188 = vunpack.c.h.b16 %v101
    %v189 = vunpack.c.l.b16 %v102
    %v190 = vunpack.c.l.b16 %v103
    %v191 = vunpack.c.h.b16 %v103
    %v192 = vunpack.c.l.b16 %v104
    %v193 = vpack.c.b16 %v148, %v145
    %v194 = vpack.c.b16 %v149, %v146
    %v195 = vpack.c.b16 %v150, %v147
    %v196 = vpack.c.b16 %v154, %v151
    %v197 = vpack.c.b16 %v155, %v152
    %v198 = vpack.c.b16 %v156, %v153
    %v199 = vpack.c.b16 %v160, %v157
    %v200 = vpack.c.b16 %v161, %v158
    %v201 = vpack.c.b16 %v162, %v159
    %v202 = vpack.c.b16 %v166, %v163
    %v203 = vpack.c.b16 %v167, %v164
    %v204 = vpack.c.b16 %v168, %v165
    %v205 = vpack.c.b16 %v172, %v169
    %v206 = vpack.c.b16 %v173, %v170
    %v207 = vpack.c.b16 %v174, %v171
    %v208 = vpack.c.b16 %v178, %v175
    %v209 = vpack.c.b16 %v179, %v176
    %v210 = vpack.c.b16 %v180, %v177
    %v211 = vpack.c.b16 %v184, %v181
    %v212 = vpack.c.b16 %v185, %v182
    %v213 = vpack.c.b16 %v186, %v183
    %v214 = vpack.c.b16 %v190, %v187
    %v215 = vpack.c.b16 %v191, %v188
    %v216 = vpack.c.b16 %v192, %v189
    %241 = vmatpush.bf16.msra.mxu0 %v214
    %242 = vmatpush.bf16.msra.mxu0 %v211
    %243 = vmatpush.bf16.msra.mxu0 %v208
    %244 = vmatpush.bf16.msra.mxu0 %v205
    %245 = vmatpush.bf16.msra.mxu0 %v202
    %246 = vmatpush.bf16.msra.mxu0 %v199
    %247 = vmatpush.bf16.msra.mxu0 %v196
    %248 = vmatpush.bf16.msra.mxu0 %v193
    %249 = vmatmul.bf16.gmra.mxu0 %v69
    %v250 = vpop.f32.mrf.mxu0
    %v251 = vadd.f32 %v107, %v250
    %v252 = vpop.f32.mrf.mxu0
    %v253 = vadd.f32 %v107, %v252
    %254 = vmatmul.bf16.gmra.mxu0 %v70
    %v255 = vpop.f32.mrf.mxu0
    %v256 = vadd.f32 %v107, %v255
    %v257 = vpop.f32.mrf.mxu0
    %v258 = vadd.f32 %v107, %v257
    %259 = vmatmul.bf16.gmra.mxu0 %v71
    %v260 = vpop.f32.mrf.mxu0
    %v261 = vadd.f32 %v107, %v260
    %v262 = vpop.f32.mrf.mxu0
    %v263 = vadd.f32 %v107, %v262
    %264 = vmatmul.bf16.gmra.mxu0 %v72
    %v265 = vpop.f32.mrf.mxu0
    %v266 = vadd.f32 %v107, %v265
    %v267 = vpop.f32.mrf.mxu0
    %v268 = vadd.f32 %v107, %v267
    %269 = vdwg.mxu0
    %270 = vmatpush.bf16.msra.mxu0 %v215
    %271 = vmatpush.bf16.msra.mxu0 %v212
    %272 = vmatpush.bf16.msra.mxu0 %v209
    %273 = vmatpush.bf16.msra.mxu0 %v206
    %274 = vmatpush.bf16.msra.mxu0 %v203
    %275 = vmatpush.bf16.msra.mxu0 %v200
    %276 = vmatpush.bf16.msra.mxu0 %v197
    %277 = vmatpush.bf16.msra.mxu0 %v194
    %278 = vmatmul.bf16.gmra.mxu0 %v69
    %v279 = vpop.f32.mrf.mxu0
    %v280 = vadd.f32 %v108, %v279
    %v281 = vpop.f32.mrf.mxu0
    %v282 = vadd.f32 %v108, %v281
    %283 = vmatmul.bf16.gmra.mxu0 %v70
    %v284 = vpop.f32.mrf.mxu0
    %v285 = vadd.f32 %v108, %v284
    %v286 = vpop.f32.mrf.mxu0
    %v287 = vadd.f32 %v108, %v286
    %288 = vmatmul.bf16.gmra.mxu0 %v71
    %v289 = vpop.f32.mrf.mxu0
    %v290 = vadd.f32 %v108, %v289
    %v291 = vpop.f32.mrf.mxu0
    %v292 = vadd.f32 %v108, %v291
    %293 = vmatmul.bf16.gmra.mxu0 %v72
    %v294 = vpop.f32.mrf.mxu0
    %v295 = vadd.f32 %v108, %v294
    %v296 = vpop.f32.mrf.mxu0
    %v297 = vadd.f32 %v108, %v296
    %298 = vdwg.mxu0
    %299 = vmatpush.bf16.msra.mxu0 %v216
    %300 = vmatpush.bf16.msra.mxu0 %v213
    %301 = vmatpush.bf16.msra.mxu0 %v210
    %302 = vmatpush.bf16.msra.mxu0 %v207
    %303 = vmatpush.bf16.msra.mxu0 %v204
    %304 = vmatpush.bf16.msra.mxu0 %v201
    %305 = vmatpush.bf16.msra.mxu0 %v198
    %306 = vmatpush.bf16.msra.mxu0 %v195
    %307 = vmatmul.bf16.gmra.mxu0 %v69
    %v308 = vpop.f32.mrf.mxu0
    %v309 = vadd.f32 %v109, %v308
    %v310 = vpop.f32.mrf.mxu0
    %v311 = vadd.f32 %v109, %v310
    %312 = vmatmul.bf16.gmra.mxu0 %v70
    %v313 = vpop.f32.mrf.mxu0
    %v314 = vadd.f32 %v109, %v313
    %v315 = vpop.f32.mrf.mxu0
    %v316 = vadd.f32 %v109, %v315
    %317 = vmatmul.bf16.gmra.mxu0 %v71
    %v318 = vpop.f32.mrf.mxu0
    %v319 = vadd.f32 %v109, %v318
    %v320 = vpop.f32.mrf.mxu0
    %v321 = vadd.f32 %v109, %v320
    %322 = vmatmul.bf16.gmra.mxu0 %v72
    %v323 = vpop.f32.mrf.mxu0
    %v324 = vadd.f32 %v109, %v323
    %v325 = vpop.f32.mrf.mxu0
    %v326 = vadd.f32 %v109, %v325
    %327 = vdwg.mxu0
    %v328 = vpack.c.bf16 %v251, %v251
    %v329 = vpack.c.bf16 %v253, %v253
    %v330 = vpack.c.bf16 %v256, %v256
    %v331 = vpack.c.bf16 %v258, %v258
    %v332 = vpack.c.bf16 %v261, %v261
    %v333 = vpack.c.bf16 %v263, %v263
    %v334 = vpack.c.bf16 %v266, %v266
    %v335 = vpack.c.bf16 %v268, %v268
    %v336 = vpack.c.bf16 %v280, %v280
    %v337 = vpack.c.bf16 %v282, %v282
    %v338 = vpack.c.bf16 %v285, %v285
    %v339 = vpack.c.bf16 %v287, %v287
    %v340 = vpack.c.bf16 %v290, %v290
    %v341 = vpack.c.bf16 %v292, %v292
    %v342 = vpack.c.bf16 %v295, %v295
    %v343 = vpack.c.bf16 %v297, %v297
    %v344 = vpack.c.bf16 %v309, %v309
    %v345 = vpack.c.bf16 %v311, %v311
    %v346 = vpack.c.bf16 %v314, %v314
    %v347 = vpack.c.bf16 %v316, %v316
    %v348 = vpack.c.bf16 %v319, %v319
    %v349 = vpack.c.bf16 %v321, %v321
    %v350 = vpack.c.bf16 %v324, %v324
    %v351 = vpack.c.bf16 %v326, %v326
    %v354 = vunpack.c.l.b16 %v328
    %v355 = vunpack.c.l.b16 %v329
    %v356 = vpack.c.b16 %v355, %v354
    %v360 = vunpack.c.l.b16 %v336
    %v361 = vunpack.c.l.b16 %v337
    %v362 = vpack.c.b16 %v361, %v360
    %364 = vmatpush.bf16.xpose.msra.mxu0 0
    %365 = vmatpush.bf16.xpose.msra.mxu0 0
    %366 = vmatpush.bf16.xpose.msra.mxu0 0
    %367 = vmatpush.bf16.xpose.msra.mxu0 0
    %368 = vmatpush.bf16.xpose.msra.mxu0 0
    %369 = vmatpush.bf16.xpose.msra.mxu0 0
    %370 = vmatpush.bf16.xpose.msra.mxu0 0
    %371 = vmatpush.bf16.xpose.msra.mxu0 %v362
    %372 = vmatmul.bf16.gmra.mxu0 %v356
    %v373 = vpop.f32.mrf.mxu0
    %v374 = vadd.f32 0.0, %v373
    %v375 = vpop.f32.mrf.mxu0
    %v376 = vadd.f32 0.0, %v375
    %377 = vdwg.mxu0
    %v380 = vunpack.c.l.b16 %v330
    %v381 = vunpack.c.l.b16 %v331
    %v382 = vpack.c.b16 %v381, %v380
    %v386 = vunpack.c.l.b16 %v338
    %v387 = vunpack.c.l.b16 %v339
    %v388 = vpack.c.b16 %v387, %v386
    %390 = vmatpush.bf16.xpose.msra.mxu0 0
    %391 = vmatpush.bf16.xpose.msra.mxu0 0
    %392 = vmatpush.bf16.xpose.msra.mxu0 0
    %393 = vmatpush.bf16.xpose.msra.mxu0 0
    %394 = vmatpush.bf16.xpose.msra.mxu0 0
    %395 = vmatpush.bf16.xpose.msra.mxu0 0
    %396 = vmatpush.bf16.xpose.msra.mxu0 0
    %397 = vmatpush.bf16.xpose.msra.mxu0 %v388
    %398 = vmatmul.bf16.gmra.mxu0 %v382
    %v399 = vpop.f32.mrf.mxu0
    %v400 = vadd.f32 0.0, %v399
    %v401 = vpop.f32.mrf.mxu0
    %v402 = vadd.f32 0.0, %v401
    %403 = vdwg.mxu0
    %v406 = vunpack.c.l.b16 %v332
    %v407 = vunpack.c.l.b16 %v333
    %v408 = vpack.c.b16 %v407, %v406
    %v412 = vunpack.c.l.b16 %v340
    %v413 = vunpack.c.l.b16 %v341
    %v414 = vpack.c.b16 %v413, %v412
    %416 = vmatpush.bf16.xpose.msra.mxu0 0
    %417 = vmatpush.bf16.xpose.msra.mxu0 0
    %418 = vmatpush.bf16.xpose.msra.mxu0 0
    %419 = vmatpush.bf16.xpose.msra.mxu0 0
    %420 = vmatpush.bf16.xpose.msra.mxu0 0
    %421 = vmatpush.bf16.xpose.msra.mxu0 0
    %422 = vmatpush.bf16.xpose.msra.mxu0 0
    %423 = vmatpush.bf16.xpose.msra.mxu0 %v414
    %424 = vmatmul.bf16.gmra.mxu0 %v408
    %v425 = vpop.f32.mrf.mxu0
    %v426 = vadd.f32 0.0, %v425
    %v427 = vpop.f32.mrf.mxu0
    %v428 = vadd.f32 0.0, %v427
    %429 = vdwg.mxu0
    %v432 = vunpack.c.l.b16 %v334
    %v433 = vunpack.c.l.b16 %v335
    %v434 = vpack.c.b16 %v433, %v432
    %v438 = vunpack.c.l.b16 %v342
    %v439 = vunpack.c.l.b16 %v343
    %v440 = vpack.c.b16 %v439, %v438
    %442 = vmatpush.bf16.xpose.msra.mxu0 0
    %443 = vmatpush.bf16.xpose.msra.mxu0 0
    %444 = vmatpush.bf16.xpose.msra.mxu0 0
    %445 = vmatpush.bf16.xpose.msra.mxu0 0
    %446 = vmatpush.bf16.xpose.msra.mxu0 0
    %447 = vmatpush.bf16.xpose.msra.mxu0 0
    %448 = vmatpush.bf16.xpose.msra.mxu0 0
    %449 = vmatpush.bf16.xpose.msra.mxu0 %v440
    %450 = vmatmul.bf16.gmra.mxu0 %v434
    %v451 = vpop.f32.mrf.mxu0
    %v452 = vadd.f32 0.0, %v451
    %v453 = vpop.f32.mrf.mxu0
    %v454 = vadd.f32 0.0, %v453
    %455 = vdwg.mxu0
    %vm456 = vcmask 130048
    %v457 = vsel %vm456, %v374, -inf
    %458 = vmax.xlane.f32.xlu0 %v457
    %v459 = vpop.xlane.xlu0 %458
    %v460 = vsel %vm456, %v376, -inf
    %461 = vmax.xlane.f32.xlu0 %v460
    %v462 = vpop.xlane.xlu0 %461
    %v463 = vsel %vm456, %v400, -inf
    %464 = vmax.xlane.f32.xlu0 %v463
    %v465 = vpop.xlane.xlu0 %464
    %v466 = vsel %vm456, %v402, -inf
    %467 = vmax.xlane.f32.xlu0 %v466
    %v468 = vpop.xlane.xlu0 %467
    %v469 = vsel %vm456, %v426, -inf
    %470 = vmax.xlane.f32.xlu0 %v469
    %v471 = vpop.xlane.xlu0 %470
    %v472 = vsel %vm456, %v428, -inf
    %473 = vmax.xlane.f32.xlu0 %v472
    %v474 = vpop.xlane.xlu0 %473
    %v475 = vsel %vm456, %v452, -inf
    %476 = vmax.xlane.f32.xlu0 %v475
    %v477 = vpop.xlane.xlu0 %476
    %v478 = vsel %vm456, %v454, -inf
    %479 = vmax.xlane.f32.xlu0 %v478
    %v480 = vpop.xlane.xlu0 %479
    %v481 = vsub.f32 %v374, %v459
    %v482 = vsub.f32 %v376, %v462
    %v483 = vsub.f32 %v400, %v465
    %v484 = vsub.f32 %v402, %v468
    %v485 = vsub.f32 %v426, %v471
    %v486 = vsub.f32 %v428, %v474
    %v487 = vsub.f32 %v452, %v477
    %v488 = vsub.f32 %v454, %v480
    %v489 = vmul.f32 %v481, 1.442695
    %v490 = vpow.pop %v489
    %v491 = vmul.f32 %v482, 1.442695
    %v492 = vpow.pop %v491
    %v493 = vmul.f32 %v483, 1.442695
    %v494 = vpow.pop %v493
    %v495 = vmul.f32 %v484, 1.442695
    %v496 = vpow.pop %v495
    %v497 = vmul.f32 %v485, 1.442695
    %v498 = vpow.pop %v497
    %v499 = vmul.f32 %v486, 1.442695
    %v500 = vpow.pop %v499
    %v501 = vmul.f32 %v487, 1.442695
    %v502 = vpow.pop %v501
    %v503 = vmul.f32 %v488, 1.442695
    %v504 = vpow.pop %v503
    %v505 = vsel %vm456, %v490, 0.0
    %506 = vadd.xlane.f32.xlu0 %v505
    %v507 = vpop.xlane.xlu0 %506
    %v508 = vsel %vm456, %v492, 0.0
    %509 = vadd.xlane.f32.xlu0 %v508
    %v510 = vpop.xlane.xlu0 %509
    %v511 = vsel %vm456, %v494, 0.0
    %512 = vadd.xlane.f32.xlu0 %v511
    %v513 = vpop.xlane.xlu0 %512
    %v514 = vsel %vm456, %v496, 0.0
    %515 = vadd.xlane.f32.xlu0 %v514
    %v516 = vpop.xlane.xlu0 %515
    %v517 = vsel %vm456, %v498, 0.0
    %518 = vadd.xlane.f32.xlu0 %v517
    %v519 = vpop.xlane.xlu0 %518
    %v520 = vsel %vm456, %v500, 0.0
    %521 = vadd.xlane.f32.xlu0 %v520
    %v522 = vpop.xlane.xlu0 %521
    %v523 = vsel %vm456, %v502, 0.0
    %524 = vadd.xlane.f32.xlu0 %v523
    %v525 = vpop.xlane.xlu0 %524
    %v526 = vsel %vm456, %v504, 0.0
    %527 = vadd.xlane.f32.xlu0 %v526
    %v528 = vpop.xlane.xlu0 %527
    %v529 = vrcp.pop %v507
    %v530 = vrcp.pop %v510
    %v531 = vrcp.pop %v513
    %v532 = vrcp.pop %v516
    %v533 = vrcp.pop %v519
    %v534 = vrcp.pop %v522
    %v535 = vrcp.pop %v525
    %v536 = vrcp.pop %v528
    %v537 = vmul.f32 %v490, %v529
    %v538 = vmul.f32 %v492, %v530
    %v539 = vmul.f32 %v494, %v531
    %v540 = vmul.f32 %v496, %v532
    %v541 = vmul.f32 %v498, %v533
    %v542 = vmul.f32 %v500, %v534
    %v543 = vmul.f32 %v502, %v535
    %v544 = vmul.f32 %v504, %v536
    %v545 = vpack.c.bf16 %v537, %v537
    %v546 = vpack.c.bf16 %v538, %v538
    %v547 = vpack.c.bf16 %v539, %v539
    %v548 = vpack.c.bf16 %v540, %v540
    %v549 = vpack.c.bf16 %v541, %v541
    %v550 = vpack.c.bf16 %v542, %v542
    %v551 = vpack.c.bf16 %v543, %v543
    %v552 = vpack.c.bf16 %v544, %v544
    %v555 = vunpack.c.l.b16 %v545
    %v556 = vunpack.c.l.b16 %v546
    %v557 = vpack.c.b16 %v556, %v555
    %v560 = vunpack.c.l.b16 %v344
    %v561 = vunpack.c.l.b16 %v345
    %v562 = vpack.c.b16 %v561, %v560
    %v565 = vsel %vm456, %v557, 0
    %567 = vmatpush.bf16.msra.mxu0 0
    %568 = vmatpush.bf16.msra.mxu0 0
    %569 = vmatpush.bf16.msra.mxu0 0
    %570 = vmatpush.bf16.msra.mxu0 0
    %571 = vmatpush.bf16.msra.mxu0 0
    %572 = vmatpush.bf16.msra.mxu0 0
    %573 = vmatpush.bf16.msra.mxu0 0
    %574 = vmatpush.bf16.msra.mxu0 %v562
    %575 = vmatmul.bf16.gmra.mxu0 %v565
    %v576 = vpop.f32.mrf.mxu0
    %v577 = vadd.f32 0.0, %v576
    %v578 = vpop.f32.mrf.mxu0
    %v579 = vadd.f32 0.0, %v578
    %580 = vdwg.mxu0
    %v583 = vunpack.c.l.b16 %v547
    %v584 = vunpack.c.l.b16 %v548
    %v585 = vpack.c.b16 %v584, %v583
    %v588 = vunpack.c.l.b16 %v346
    %v589 = vunpack.c.l.b16 %v347
    %v590 = vpack.c.b16 %v589, %v588
    %v593 = vsel %vm456, %v585, 0
    %595 = vmatpush.bf16.msra.mxu0 0
    %596 = vmatpush.bf16.msra.mxu0 0
    %597 = vmatpush.bf16.msra.mxu0 0
    %598 = vmatpush.bf16.msra.mxu0 0
    %599 = vmatpush.bf16.msra.mxu0 0
    %600 = vmatpush.bf16.msra.mxu0 0
    %601 = vmatpush.bf16.msra.mxu0 0
    %602 = vmatpush.bf16.msra.mxu0 %v590
    %603 = vmatmul.bf16.gmra.mxu0 %v593
    %v604 = vpop.f32.mrf.mxu0
    %v605 = vadd.f32 0.0, %v604
    %v606 = vpop.f32.mrf.mxu0
    %v607 = vadd.f32 0.0, %v606
    %608 = vdwg.mxu0
    %v611 = vunpack.c.l.b16 %v549
    %v612 = vunpack.c.l.b16 %v550
    %v613 = vpack.c.b16 %v612, %v611
    %v616 = vunpack.c.l.b16 %v348
    %v617 = vunpack.c.l.b16 %v349
    %v618 = vpack.c.b16 %v617, %v616
    %v621 = vsel %vm456, %v613, 0
    %623 = vmatpush.bf16.msra.mxu0 0
    %624 = vmatpush.bf16.msra.mxu0 0
    %625 = vmatpush.bf16.msra.mxu0 0
    %626 = vmatpush.bf16.msra.mxu0 0
    %627 = vmatpush.bf16.msra.mxu0 0
    %628 = vmatpush.bf16.msra.mxu0 0
    %629 = vmatpush.bf16.msra.mxu0 0
    %630 = vmatpush.bf16.msra.mxu0 %v618
    %631 = vmatmul.bf16.gmra.mxu0 %v621
    %v632 = vpop.f32.mrf.mxu0
    %v633 = vadd.f32 0.0, %v632
    %v634 = vpop.f32.mrf.mxu0
    %v635 = vadd.f32 0.0, %v634
    %636 = vdwg.mxu0
    %v639 = vunpack.c.l.b16 %v551
    %v640 = vunpack.c.l.b16 %v552
    %v641 = vpack.c.b16 %v640, %v639
    %v644 = vunpack.c.l.b16 %v350
    %v645 = vunpack.c.l.b16 %v351
    %v646 = vpack.c.b16 %v645, %v644
    %v649 = vsel %vm456, %v641, 0
    %651 = vmatpush.bf16.msra.mxu0 0
    %652 = vmatpush.bf16.msra.mxu0 0
    %653 = vmatpush.bf16.msra.mxu0 0
    %654 = vmatpush.bf16.msra.mxu0 0
    %655 = vmatpush.bf16.msra.mxu0 0
    %656 = vmatpush.bf16.msra.mxu0 0
    %657 = vmatpush.bf16.msra.mxu0 0
    %658 = vmatpush.bf16.msra.mxu0 %v646
    %659 = vmatmul.bf16.gmra.mxu0 %v649
    %v660 = vpop.f32.mrf.mxu0
    %v661 = vadd.f32 0.0, %v660
    %v662 = vpop.f32.mrf.mxu0
    %v663 = vadd.f32 0.0, %v662
    %664 = vdwg.mxu0
    %665 = vst [vmem:[#allocation8] sm:$0xff] %v577
    %666 = vst [vmem:[#allocation8 + $0x8] sm:$0xff] %v579
    %667 = vst [vmem:[#allocation8 + $0x10] sm:$0xff] %v605
    %668 = vst [vmem:[#allocation8 + $0x18] sm:$0xff] %v607
    %669 = vst [vmem:[#allocation8 + $0x20] sm:$0xff] %v633
    %670 = vst [vmem:[#allocation8 + $0x28] sm:$0xff] %v635
    %671 = vst [vmem:[#allocation8 + $0x30] sm:$0xff] %v661
    %672 = vst [vmem:[#allocation8 + $0x38] sm:$0xff] %v663
    // Predicated region
    $region26: #{self_attention_fused.1} parent=1 // pred_check
      _
    $region27: #{self_attention_fused.1} parent=1 // pred_check_branch
      %674 = sbr.rel (0) target = $region29
    $region28: #{self_attention_fused.1} parent=1 // pred_region
      %676 = vsyncadd [#allocation4], 0
      %s677 = sshll.u32 [#allocation8], 4
      %s678 = int_to_ptr.vmem [resolvable:$true] %s677
      %s679 = sshll.u32 %s3, 4
      %s680 = int_to_ptr.hbm [resolvable:$true] %s679
      %685 = dma.vmem_to_hbm [thread:$0]  %s678, 1024, %s680, [#allocation4], 128, 128, 8
    $region29: #{self_attention_fused.1} parent=1 // pred_fallthru
      _
    // Predicated region
    $region30: #{self_attention_fused.1} parent=1 // pred_check
      _
    $region31: #{self_attention_fused.1} parent=1 // pred_check_branch
      %687 = sbr.rel (0) target = $region33
    $region32: #{self_attention_fused.1} parent=1 // pred_region
      %689 = dma.done [#allocation4], 1024
    $region33: #{self_attention_fused.1} parent=1 // pred_fallthru
      _
    %690 = vsyncpa [#allocation3], 1
    %691 = vsyncpa [#allocation6], 1
    %692 = vsyncpa [#allocation4], 1

</llo_original>
